<compile_context>
chip_gen: v5e
topology: v5e:2x2
jax: 0.10.0
libtpu: 0.0.40
codegen_flags: <defaults>
</compile_context>

<pallas_src>
import functools

import jax
import jax.numpy as jnp
from jax.experimental import pallas as pl
from jax.experimental.pallas import tpu as pltpu

_LANE = 128
_SUB = 8


def _multi_combo_partial_kernel(x_ref, t_ref, out_ref, *, alpha, eps, has_pad):
    """Accumulates per-class partial sums for one (batch, split) pair.

    out_ref block: (1, 4*C, 8, 128) f32, resident across the spatial-tile axis.
      rows [0:C)   -> sum(p_c * 1[t==c])   (dice intersection)
      rows [C:2C)  -> sum(p_c)             (dice denominator, probabilities)
      rows [2C:3C) -> sum(1[t==c])         (dice denominator, targets)
      rows [3C:4C) -> sum(CE log terms)
    """
    j = pl.program_id(2)

    @pl.when(j == 0)
    def _():
        out_ref[...] = jnp.zeros_like(out_ref)

    x = x_ref[0].astype(jnp.float32)          # (C, tR, 128)
    t = t_ref[0]                              # (tR, 128) int32
    C, tR, L = x.shape

    # Softmax over the class axis: elementwise max/exp/add across the C slabs
    # (VPU/EUP only, no cross-lane work), one reciprocal per pixel.
    m = jnp.max(x, axis=0, keepdims=True)     # (1, tR, 128)
    e = jnp.exp(x - m)                        # (C, tR, 128)
    se = jnp.sum(e, axis=0, keepdims=True)    # (1, tR, 128)
    inv = pl.reciprocal(se)                   # exact; approx=True only if validated
    if has_pad:
        # Padded pixels carry label -1: zero them out of every accumulator.
        valid = (t >= 0).astype(jnp.float32)[None]    # (1, tR, 128)
        inv = inv * valid
    p = e * inv                               # (C, tR, 128)

    cls = jax.lax.broadcasted_iota(jnp.int32, p.shape, 0)
    mask = cls == t[None]                     # (C, tR, 128) bool
    mask_f = mask.astype(jnp.float32)

    # BinaryComboLoss CE term with one log per element:
    #   mask*log(p) + (1-alpha)*(1-mask)*log(1-p), clamped below at eps.
    arg = jnp.maximum(jnp.where(mask, p, 1.0 - p), eps)
    scale = jnp.where(mask, jnp.float32(1.0), jnp.float32(1.0 - alpha))
    if has_pad:
        scale = scale * valid
    ce_elem = scale * jnp.log(arg)

    def rsum8(a):  # (C, tR, 128) -> (C, 8, 128): group-of-8-row vreg adds (VPU).
        return jnp.sum(a.reshape(C, tR // _SUB, _SUB, L), axis=1)

    out_ref[0, 0 * C:1 * C] += rsum8(p * mask_f)
    out_ref[0, 1 * C:2 * C] += rsum8(p)
    out_ref[0, 2 * C:3 * C] += rsum8(mask_f)
    out_ref[0, 3 * C:4 * C] += rsum8(ce_elem)


def _logits_block_budget_bytes():
    # 6 MiB blocks on 128-MiB-VMEM chips (v5e/v6e), 4 MiB on 64-MiB v7x.
    # Double-buffered logits+targets footprint stays well under ~16 MiB.
    try:
        vmem = pltpu.get_tpu_info().vmem_capacity_bytes
    except Exception:
        vmem = 64 * 1024 * 1024
    return 6 * 1024 * 1024 if vmem >= 128 * 1024 * 1024 else 4 * 1024 * 1024


def _pick_tile_rows(rows, C, itemsize):
    budget = _logits_block_budget_bytes()
    t = budget // max(1, C * _LANE * itemsize)
    t = max(_SUB, (t // _SUB) * _SUB)         # sublane-aligned
    rows8 = pl.cdiv(rows, _SUB) * _SUB
    return min(t, rows8)


def multi_combo_loss(inputs, targets, *, num_classes, alpha=0.5, ce_ratio=0.5,
                     weight=None, smooth=1.0):
    """inputs: (N, C, H, W) float logits; targets: (N, H, W) integer labels."""
    N, C, H, W = inputs.shape
    assert C == num_classes
    S = H * W
    eps = 1e-7

    rows = pl.cdiv(S, _LANE)
    t_rows = _pick_tile_rows(rows, C, jnp.dtype(inputs.dtype).itemsize)
    n_tiles = pl.cdiv(rows, t_rows)

    # Split the spatial-tile axis in two ("parallel") so both v7x TensorCores
    # get work even when N == 1; harmless on single-core v5e/v6e.  Only round
    # up to an even tile count when the extra (fully masked) tile is cheap.
    if n_tiles >= 2 and (n_tiles % 2 == 0 or n_tiles >= 9):
        n_splits = 2
    else:
        n_splits = 1
    tiles_per_split = pl.cdiv(n_tiles, n_splits)
    rows_p = n_splits * tiles_per_split * t_rows
    pad = rows_p * _LANE - S

    x = inputs.reshape(N, C, S)               # native dtype; upcast inside kernel
    t = targets.reshape(N, S).astype(jnp.int32)
    if pad:
        x = jnp.pad(x, ((0, 0), (0, 0), (0, pad)))
        t = jnp.pad(t, ((0, 0), (0, pad)), constant_values=-1)  # -1 = no class
    x = x.reshape(N, C, rows_p, _LANE)
    t = t.reshape(N, rows_p, _LANE)

    def x_map(i, p, j):
        return (i, 0, p * tiles_per_split + j, 0)

    def t_map(i, p, j):
        return (i, p * tiles_per_split + j, 0)

    def o_map(i, p, j):
        return (i * n_splits + p, 0, 0, 0)

    kernel = functools.partial(
        _multi_combo_partial_kernel,
        alpha=float(alpha), eps=float(eps), has_pad=bool(pad))

    parts = pl.pallas_call(
        kernel,
        out_shape=jax.ShapeDtypeStruct((N * n_splits, 4 * C, _SUB, _LANE),
                                       jnp.float32),
        grid_spec=pltpu.PrefetchScalarGridSpec(
            num_scalar_prefetch=0,
            grid=(N, n_splits, tiles_per_split),
            in_specs=[
                pl.BlockSpec((1, C, t_rows, _LANE), x_map),
                pl.BlockSpec((1, t_rows, _LANE), t_map),
            ],
            out_specs=pl.BlockSpec((1, 4 * C, _SUB, _LANE), o_map),
        ),
        compiler_params=pltpu.CompilerParams(
            dimension_semantics=("parallel", "parallel", "arbitrary"),
            vmem_limit_bytes=32 * 1024 * 1024),
    )(x, t)

    # Tiny O(C) finalize in plain JAX (the only cross-lane reduce in the whole op).
    totals = jnp.sum(parts.reshape(N * n_splits, 4, C, _SUB * _LANE),
                     axis=(0, 3))                              # (4, C)
    TP, SP, CNT, CE = totals[0], totals[1], totals[2], totals[3]
    dice = (2.0 * TP + smooth) / (SP + CNT + smooth)
    weighted_ce = -(alpha * CE) / float(N * S)
    combo = ce_ratio * weighted_ce - (1.0 - ce_ratio) * dice
    if weight is not None:
        combo = combo * jnp.asarray(weight, jnp.float32)
    return jnp.sum(combo)


def _reference(inputs, targets, *, num_classes, alpha=0.5, ce_ratio=0.5,
               weight=None, smooth=1.0):
    """Pure-JAX mirror of the PyTorch MultiComboLoss forward."""
    eps = 1e-7
    p = jax.nn.softmax(inputs.astype(jnp.float32), axis=1)
    total = jnp.float32(0.0)
    for c in range(num_classes):
        pc = p[:, c].reshape(-1)
        tc = (targets == c).astype(jnp.float32).reshape(-1)
        inter = jnp.sum(pc * tc)
        dice = (2.0 * inter + smooth) / (jnp.sum(pc) + jnp.sum(tc) + smooth)
        pcl = jnp.clip(pc, eps, 1.0 - eps)
        out = -(alpha * (tc * jnp.log(pcl)
                         + (1.0 - alpha) * (1.0 - tc) * jnp.log(1.0 - pcl)))
        wce = jnp.mean(out)
        combo = ce_ratio * wce - (1.0 - ce_ratio) * dice
        if weight is not None:
            combo = combo * weight[c]
        total = total + combo
    return total


if __name__ == "__main__":
    key = jax.random.PRNGKey(0)
    k1, k2 = jax.random.split(key)

    N, C, H, W = 2, 4, 16, 16
    inputs = jax.random.normal(k1, (N, C, H, W), dtype=jnp.float32)
    targets = jax.random.randint(k2, (N, H, W), 0, C, dtype=jnp.int32)

    loss = multi_combo_loss(inputs, targets, num_classes=C,
                            alpha=0.5, ce_ratio=0.5, smooth=1.0)
    loss = jax.block_until_ready(loss)

    ref = _reference(inputs, targets, num_classes=C,
                     alpha=0.5, ce_ratio=0.5, smooth=1.0)
    assert jnp.allclose(loss, ref, rtol=1e-4, atol=1e-5), (loss, ref)

    print("KERNEL_OK")
</pallas_src>

<mosaic_0001>
module attributes {stable_mosaic.version = 11 : i64} {
  func.func @_multi_combo_partial_kernel(%arg0: i32, %arg1: i32, %arg2: i32, %arg3: memref<1x4x8x128xf32, #tpu.memory_space<vmem>>, %arg4: memref<1x8x128xi32, #tpu.memory_space<vmem>>, %arg5: memref<1x16x8x128xf32, #tpu.memory_space<vmem>>) attributes {dimension_semantics = [#tpu.dimension_semantics<parallel>, #tpu.dimension_semantics<parallel>, #tpu.dimension_semantics<arbitrary>], iteration_bounds = array<i64: 2, 1, 1>, scalar_prefetch = 0 : i64, scratch_operands = 0 : i64, tpu.core_type = #tpu.core_type<tc>, window_params = [{transform_indices = @transform_0, window_bounds = array<i64: 1, 4, 8, 128>}, {transform_indices = @transform_1, window_bounds = array<i64: 1, 8, 128>}, {transform_indices = @transform_2, window_bounds = array<i64: 1, 16, 8, 128>}]} {
    %c0_i32 = arith.constant 0 : i32
    %0 = arith.cmpi eq, %arg2, %c0_i32 : i32
    %1 = arith.extui %0 : i1 to i32
    %c0_i32_0 = arith.constant 0 : i32
    %2 = arith.cmpi ne, %1, %c0_i32_0 : i32
    scf.if %2 {
      %cst_46 = arith.constant 0.000000e+00 : f32
      %74 = vector.broadcast %cst_46 : f32 to vector<1x16x8x128xf32>
      %c0_47 = arith.constant 0 : index
      %c0_48 = arith.constant 0 : index
      %c0_49 = arith.constant 0 : index
      %c0_50 = arith.constant 0 : index
      %75 = vector.load %arg5[%c0_47, %c0_48, %c0_49, %c0_50] : memref<1x16x8x128xf32, #tpu.memory_space<vmem>>, vector<1x16x8x128xf32>
      tpu.vector_store %arg5[%c0_47, %c0_48, %c0_49, %c0_50], %74 {strides = array<i32>} : memref<1x16x8x128xf32, #tpu.memory_space<vmem>>, vector<1x16x8x128xf32>,
    } else {
    }
    %c0 = arith.constant 0 : index
    %c0_1 = arith.constant 0 : index
    %c0_2 = arith.constant 0 : index
    %c0_3 = arith.constant 0 : index
    %3 = vector.load %arg3[%c0, %c0_1, %c0_2, %c0_3] : memref<1x4x8x128xf32, #tpu.memory_space<vmem>>, vector<1x4x8x128xf32>
    %4 = vector.shape_cast %3 : vector<1x4x8x128xf32> to vector<4x8x128xf32>
    %c0_4 = arith.constant 0 : index
    %c0_5 = arith.constant 0 : index
    %c0_6 = arith.constant 0 : index
    %5 = vector.load %arg4[%c0_4, %c0_5, %c0_6] : memref<1x8x128xi32, #tpu.memory_space<vmem>>, vector<1x8x128xi32>
    %6 = vector.shape_cast %5 : vector<1x8x128xi32> to vector<8x128xi32>
    %cst = arith.constant dense<0xFF800000> : vector<8x128xf32>
    %7 = vector.multi_reduction <maximumf>, %4, %cst [0] : vector<4x8x128xf32> to vector<8x128xf32>
    %8 = vector.shape_cast %7 : vector<8x128xf32> to vector<1x8x128xf32>
    %9 = vector.broadcast %8 : vector<1x8x128xf32> to vector<4x8x128xf32>
    %10 = arith.subf %4, %9 : vector<4x8x128xf32>
    %11 = math.exp %10 : vector<4x8x128xf32>
    %cst_7 = arith.constant dense<0.000000e+00> : vector<8x128xf32>
    %12 = vector.multi_reduction <add>, %11, %cst_7 [0] : vector<4x8x128xf32> to vector<8x128xf32>
    %13 = vector.shape_cast %12 : vector<8x128xf32> to vector<1x8x128xf32>
    %14 = tpu.reciprocal %13 : vector<1x8x128xf32> -> vector<1x8x128xf32>
    %c0_i32_8 = arith.constant 0 : i32
    %15 = vector.broadcast %c0_i32_8 : i32 to vector<8x128xi32>
    %16 = arith.cmpi sge, %6, %15 : vector<8x128xi32>
    %17 = arith.extui %16 : vector<8x128xi1> to vector<8x128xi32>
    %18 = arith.sitofp %17 : vector<8x128xi32> to vector<8x128xf32>
    %19 = vector.shape_cast %18 : vector<8x128xf32> to vector<1x8x128xf32>
    %20 = arith.mulf %14, %19 : vector<1x8x128xf32>
    %21 = vector.broadcast %20 : vector<1x8x128xf32> to vector<4x8x128xf32>
    %22 = arith.mulf %11, %21 : vector<4x8x128xf32>
    %23 = tpu.iota {dimensions = array<i32: 0>} : vector<4x8x128xi32>
    %24 = vector.shape_cast %6 : vector<8x128xi32> to vector<1x8x128xi32>
    %25 = vector.broadcast %24 : vector<1x8x128xi32> to vector<4x8x128xi32>
    %26 = arith.cmpi eq, %23, %25 : vector<4x8x128xi32>
    %27 = arith.extui %26 : vector<4x8x128xi1> to vector<4x8x128xi32>
    %28 = arith.sitofp %27 : vector<4x8x128xi32> to vector<4x8x128xf32>
    %cst_9 = arith.constant 1.000000e+00 : f32
    %29 = vector.broadcast %cst_9 : f32 to vector<4x8x128xf32>
    %30 = arith.subf %29, %22 : vector<4x8x128xf32>
    %31 = arith.select %26, %22, %30 : vector<4x8x128xi1>, vector<4x8x128xf32>
    %cst_10 = arith.constant 1.000000e-07 : f32
    %32 = vector.broadcast %cst_10 : f32 to vector<4x8x128xf32>
    %33 = arith.maximumf %31, %32 : vector<4x8x128xf32>
    %cst_11 = arith.constant 1.000000e+00 : f32
    %cst_12 = arith.constant 5.000000e-01 : f32
    %34 = vector.broadcast %cst_11 : f32 to vector<4x8x128xf32>
    %35 = vector.broadcast %cst_12 : f32 to vector<4x8x128xf32>
    %36 = arith.select %26, %34, %35 : vector<4x8x128xi1>, vector<4x8x128xf32>
    %37 = vector.broadcast %19 : vector<1x8x128xf32> to vector<4x8x128xf32>
    %38 = arith.mulf %36, %37 : vector<4x8x128xf32>
    %39 = math.log %33 : vector<4x8x128xf32>
    %40 = arith.mulf %38, %39 : vector<4x8x128xf32>
    %c0_13 = arith.constant 0 : index
    %c0_14 = arith.constant 0 : index
    %c0_15 = arith.constant 0 : index
    %c0_16 = arith.constant 0 : index
    %41 = vector.load %arg5[%c0_13, %c0_14, %c0_15, %c0_16] : memref<1x16x8x128xf32, #tpu.memory_space<vmem>>, vector<1x4x8x128xf32>
    %42 = vector.shape_cast %41 : vector<1x4x8x128xf32> to vector<4x8x128xf32>
    %43 = arith.mulf %22, %28 : vector<4x8x128xf32>
    %44 = vector.shape_cast %43 : vector<4x8x128xf32> to vector<4x1x8x128xf32>
    %cst_17 = arith.constant dense<0.000000e+00> : vector<4x8x128xf32>
    %45 = vector.multi_reduction <add>, %44, %cst_17 [1] : vector<4x1x8x128xf32> to vector<4x8x128xf32>
    %46 = arith.addf %42, %45 : vector<4x8x128xf32>
    %c0_18 = arith.constant 0 : index
    %c0_19 = arith.constant 0 : index
    %c0_20 = arith.constant 0 : index
    %c0_21 = arith.constant 0 : index
    %47 = vector.load %arg5[%c0_18, %c0_19, %c0_20, %c0_21] : memref<1x16x8x128xf32, #tpu.memory_space<vmem>>, vector<1x4x8x128xf32>
    %48 = vector.shape_cast %47 : vector<1x4x8x128xf32> to vector<4x8x128xf32>
    %49 = vector.shape_cast %46 : vector<4x8x128xf32> to vector<1x4x8x128xf32>
    tpu.vector_store %arg5[%c0_18, %c0_19, %c0_20, %c0_21], %49 {strides = array<i32>} : memref<1x16x8x128xf32, #tpu.memory_space<vmem>>, vector<1x4x8x128xf32>,
    %c0_22 = arith.constant 0 : index
    %c4 = arith.constant 4 : index
    %c0_23 = arith.constant 0 : index
    %c0_24 = arith.constant 0 : index
    %50 = vector.load %arg5[%c0_22, %c4, %c0_23, %c0_24] : memref<1x16x8x128xf32, #tpu.memory_space<vmem>>, vector<1x4x8x128xf32>
    %51 = vector.shape_cast %50 : vector<1x4x8x128xf32> to vector<4x8x128xf32>
    %52 = vector.shape_cast %22 : vector<4x8x128xf32> to vector<4x1x8x128xf32>
    %cst_25 = arith.constant dense<0.000000e+00> : vector<4x8x128xf32>
    %53 = vector.multi_reduction <add>, %52, %cst_25 [1] : vector<4x1x8x128xf32> to vector<4x8x128xf32>
    %54 = arith.addf %51, %53 : vector<4x8x128xf32>
    %c0_26 = arith.constant 0 : index
    %c4_27 = arith.constant 4 : index
    %c0_28 = arith.constant 0 : index
    %c0_29 = arith.constant 0 : index
    %55 = vector.load %arg5[%c0_26, %c4_27, %c0_28, %c0_29] : memref<1x16x8x128xf32, #tpu.memory_space<vmem>>, vector<1x4x8x128xf32>
    %56 = vector.shape_cast %55 : vector<1x4x8x128xf32> to vector<4x8x128xf32>
    %57 = vector.shape_cast %54 : vector<4x8x128xf32> to vector<1x4x8x128xf32>
    tpu.vector_store %arg5[%c0_26, %c4_27, %c0_28, %c0_29], %57 {strides = array<i32>} : memref<1x16x8x128xf32, #tpu.memory_space<vmem>>, vector<1x4x8x128xf32>,
    %c0_30 = arith.constant 0 : index
    %c8 = arith.constant 8 : index
    %c0_31 = arith.constant 0 : index
    %c0_32 = arith.constant 0 : index
    %58 = vector.load %arg5[%c0_30, %c8, %c0_31, %c0_32] : memref<1x16x8x128xf32, #tpu.memory_space<vmem>>, vector<1x4x8x128xf32>
    %59 = vector.shape_cast %58 : vector<1x4x8x128xf32> to vector<4x8x128xf32>
    %60 = vector.shape_cast %28 : vector<4x8x128xf32> to vector<4x1x8x128xf32>
    %cst_33 = arith.constant dense<0.000000e+00> : vector<4x8x128xf32>
    %61 = vector.multi_reduction <add>, %60, %cst_33 [1] : vector<4x1x8x128xf32> to vector<4x8x128xf32>
    %62 = arith.addf %59, %61 : vector<4x8x128xf32>
    %c0_34 = arith.constant 0 : index
    %c8_35 = arith.constant 8 : index
    %c0_36 = arith.constant 0 : index
    %c0_37 = arith.constant 0 : index
    %63 = vector.load %arg5[%c0_34, %c8_35, %c0_36, %c0_37] : memref<1x16x8x128xf32, #tpu.memory_space<vmem>>, vector<1x4x8x128xf32>
    %64 = vector.shape_cast %63 : vector<1x4x8x128xf32> to vector<4x8x128xf32>
    %65 = vector.shape_cast %62 : vector<4x8x128xf32> to vector<1x4x8x128xf32>
    tpu.vector_store %arg5[%c0_34, %c8_35, %c0_36, %c0_37], %65 {strides = array<i32>} : memref<1x16x8x128xf32, #tpu.memory_space<vmem>>, vector<1x4x8x128xf32>,
    %c0_38 = arith.constant 0 : index
    %c12 = arith.constant 12 : index
    %c0_39 = arith.constant 0 : index
    %c0_40 = arith.constant 0 : index
    %66 = vector.load %arg5[%c0_38, %c12, %c0_39, %c0_40] : memref<1x16x8x128xf32, #tpu.memory_space<vmem>>, vector<1x4x8x128xf32>
    %67 = vector.shape_cast %66 : vector<1x4x8x128xf32> to vector<4x8x128xf32>
    %68 = vector.shape_cast %40 : vector<4x8x128xf32> to vector<4x1x8x128xf32>
    %cst_41 = arith.constant dense<0.000000e+00> : vector<4x8x128xf32>
    %69 = vector.multi_reduction <add>, %68, %cst_41 [1] : vector<4x1x8x128xf32> to vector<4x8x128xf32>
    %70 = arith.addf %67, %69 : vector<4x8x128xf32>
    %c0_42 = arith.constant 0 : index
    %c12_43 = arith.constant 12 : index
    %c0_44 = arith.constant 0 : index
    %c0_45 = arith.constant 0 : index
    %71 = vector.load %arg5[%c0_42, %c12_43, %c0_44, %c0_45] : memref<1x16x8x128xf32, #tpu.memory_space<vmem>>, vector<1x4x8x128xf32>
    %72 = vector.shape_cast %71 : vector<1x4x8x128xf32> to vector<4x8x128xf32>
    %73 = vector.shape_cast %70 : vector<4x8x128xf32> to vector<1x4x8x128xf32>
    tpu.vector_store %arg5[%c0_42, %c12_43, %c0_44, %c0_45], %73 {strides = array<i32>} : memref<1x16x8x128xf32, #tpu.memory_space<vmem>>, vector<1x4x8x128xf32>,
    return
  }
  func.func @transform_0(%arg0: i32, %arg1: i32, %arg2: i32) -> (i32, i32, i32, i32) {
    %c1_i32 = arith.constant 1 : i32
    %0 = arith.muli %arg1, %c1_i32 : i32
    %1 = arith.addi %0, %arg2 : i32
    %c0_i32 = arith.constant 0 : i32
    %c0_i32_0 = arith.constant 0 : i32
    %c0_i32_1 = arith.constant 0 : i32
    return %arg0, %c0_i32, %1, %c0_i32_0 : i32, i32, i32, i32
  }
  func.func @transform_1(%arg0: i32, %arg1: i32, %arg2: i32) -> (i32, i32, i32) {
    %c1_i32 = arith.constant 1 : i32
    %0 = arith.muli %arg1, %c1_i32 : i32
    %1 = arith.addi %0, %arg2 : i32
    %c0_i32 = arith.constant 0 : i32
    %c0_i32_0 = arith.constant 0 : i32
    return %arg0, %1, %c0_i32 : i32, i32, i32
  }
  func.func @transform_2(%arg0: i32, %arg1: i32, %arg2: i32) -> (i32, i32, i32, i32) {
    %c1_i32 = arith.constant 1 : i32
    %0 = arith.muli %arg0, %c1_i32 : i32
    %1 = arith.addi %0, %arg1 : i32
    %c0_i32 = arith.constant 0 : i32
    %c0_i32_0 = arith.constant 0 : i32
    %c0_i32_1 = arith.constant 0 : i32
    %c0_i32_2 = arith.constant 0 : i32
    return %1, %c0_i32, %c0_i32_0, %c0_i32_1 : i32, i32, i32, i32
  }
}

</mosaic_0001>

<llo_original>
// kernel: tpu_custom_call.1
$region0: #{tpu_custom_call.1}
  #allocation0 [shape = 'u32[]', space=smem, size = 0x4, offset = 0x4, fixed_abs, tag = 'smem constant byte address 0x4 - core index']
  #allocation1 [shape = 'u32[72,128]{1,0:T(1,128)}', space=vmem, size = 0x9000, scoped, tag = 'internal scratch']
  %s0 = inlined_call_operand.hbm [shape: f32[2,4,8,128], index: 0, kind: input, shape index: {}]
  %s1 = inlined_call_operand.hbm [shape: s32[2,8,128], index: 1, kind: input, shape index: {}]
  %s2 = inlined_call_operand.hbm [shape: f32[2,16,8,128], index: 2, kind: output, shape index: {}]
  %s3 = sld [smem:[#allocation0]]
  $region53: #{tpu_custom_call.1} parent=0
    _
  %s5 = ssub.s32 1, %s3
  %s6 = scalar_select 0, %s5, %s3
  $region1: #{tpu_custom_call.1} parent=0
    #allocation2 [shape = 'u8[32768]{0}', space=vmem, size = 0x8000, scoped, tag = 'input window, operand 0']
    #allocation3 [shape = 's32[2]{0}', space=sflag, size = 0x8, scoped, tag = 'scoped memory for tpu_custom_call.1']
    #allocation4 [shape = 's32[2]{0}', space=sflag, size = 0x8, scoped, tag = 'scoped memory for tpu_custom_call.1']
    #allocation5 [shape = 'u8[8192]{0}', space=vmem, size = 0x2000, scoped, tag = 'input window, operand 1']
    #allocation6 [shape = 's32[2]{0}', space=sflag, size = 0x8, scoped, tag = 'scoped memory for tpu_custom_call.1']
    #allocation7 [shape = 'u8[131072]{0}', space=vmem, size = 0x20000, scoped, tag = 'output window, operand 0']
    %7 = vsyncpa [#allocation3], 0
    %s8 = scalar_lea.sflag [#allocation3], 1
    %9 = vsyncpa %s8, 0
    %10 = vsyncpa [#allocation6], 0
    %s11 = scalar_lea.sflag [#allocation6], 1
    %12 = vsyncpa %s11, 0
    %13 = vsyncpa [#allocation4], 0
    %s14 = scalar_lea.sflag [#allocation4], 1
    %15 = vsyncpa %s14, 0
    loop: start=0, step=1, limit=4
    $region2: #{tpu_custom_call.1} parent=1 // loop_pre_header
      _
    $region3: #{tpu_custom_call.1} parent=1 // loop_header
      %s17 = sphi 0, %s21
      %p18 = scmp.ge.s32.totalorder %s17, 4
      %s24 = sphi 0, %s43
      %s25 = sphi 0, %s39
      %s26 = sphi 0, %s35
      %s27 = sphi 0, %s24
      %s28 = sphi 0, %s25
      %s29 = sphi 0, %s26
      %s30 = sphi 0, %s27
      %s31 = sphi 0, %s28
      %s32 = sphi 0, %s29
      %s50 = sphi 0, %s52
      %s53 = sphi 0, %s50
      %s54 = sphi 0, %s53
      %s70 = sphi 0, %s54
      %s80 = sphi 0, %s82
      %s83 = sphi 0, %s80
      %s84 = sphi 0, %s83
      %s100 = sphi 0, %s84
      %s108 = sphi 0, %s110
      %s111 = sphi 0, %s108
      %s112 = sphi 0, %s111
      %s128 = sphi 0, %s112
    $region4: #{tpu_custom_call.1} parent=1 // loop_header_branch
      %20 = sbr.rel (%p18) target = $region8
    $region5: #{tpu_custom_call.1} parent=1 // loop_body
      %s22 = ssub.s32 %s17, 1
      %s23 = ssub.s32 %s17, 2
      %s33 = sadd.s32 1, %s26
      %p34 = scmp.ge.s32.totalorder %s33, 1
      %s35 = scalar_select %p34, 0, %s33
      %s36 = sadd.s32 1, %s25
      %s37 = scalar_select %p34, %s36, %s25
      %p38 = scmp.ge.s32.totalorder %s37, 1
      %s39 = scalar_select %p38, 0, %s37
      %s40 = sadd.s32 1, %s24
      %s41 = scalar_select %p38, %s40, %s24
      %p42 = scmp.ge.s32.totalorder %s41, 2
      %s43 = scalar_select %p42, 0, %s41
      %s44 = sadd.s32 %s25, %s26
      %s45 = sadd.s32 %s39, %s35
      %s46 = ssub.s32 %s24, %s43
      %s47 = ssub.s32 %s44, %s45
      %s48 = sor.u32 %s46, %s47
      %p49 = scmp.eq.s32.totalorder %s48, 0
      %s51 = sadd.s32 %s50, 1
      %s52 = scalar_select %p49, %s50, %s51
      %p55 = pneg %p49
      %p56 = scmp.eq.s32.totalorder %s17, 1
      %p57 = por %p55, %p56
      %p58 = scmp.ne.s32.totalorder %s50, %s53
      %p59 = scmp.eq.s32.totalorder %s17, 0
      %p60 = por %p58, %p59
      %p61 = scmp.ne.s32.totalorder %s50, %s53
      %p62 = scmp.eq.s32.totalorder %s22, 1
      %p63 = por %p61, %p62
      %p64 = scmp.ne.s32.totalorder %s53, %s54
      %p65 = scmp.eq.s32.totalorder %s22, 0
      %p66 = por %p64, %p65
      %p67 = scmp.ne.s32.totalorder %s53, %s54
      %p68 = scmp.eq.s32.totalorder %s23, 1
      %p69 = por %p67, %p68
      %p71 = scmp.ne.s32.totalorder %s54, %s70
      %p72 = scmp.eq.s32.totalorder %s23, 0
      %p73 = por %p71, %p72
      %s74 = sadd.s32 %s25, %s26
      %s75 = sadd.s32 %s39, %s35
      %s76 = ssub.s32 %s24, %s43
      %s77 = ssub.s32 %s74, %s75
      %s78 = sor.u32 %s76, %s77
      %p79 = scmp.eq.s32.totalorder %s78, 0
      %s81 = sadd.s32 %s80, 1
      %s82 = scalar_select %p79, %s80, %s81
      %p85 = pneg %p79
      %p86 = scmp.eq.s32.totalorder %s17, 1
      %p87 = por %p85, %p86
      %p88 = scmp.ne.s32.totalorder %s80, %s83
      %p89 = scmp.eq.s32.totalorder %s17, 0
      %p90 = por %p88, %p89
      %p91 = scmp.ne.s32.totalorder %s80, %s83
      %p92 = scmp.eq.s32.totalorder %s22, 1
      %p93 = por %p91, %p92
      %p94 = scmp.ne.s32.totalorder %s83, %s84
      %p95 = scmp.eq.s32.totalorder %s22, 0
      %p96 = por %p94, %p95
      %p97 = scmp.ne.s32.totalorder %s83, %s84
      %p98 = scmp.eq.s32.totalorder %s23, 1
      %p99 = por %p97, %p98
      %p101 = scmp.ne.s32.totalorder %s84, %s100
      %p102 = scmp.eq.s32.totalorder %s23, 0
      %p103 = por %p101, %p102
      %s104 = sadd.s32 %s24, %s25
      %s105 = sadd.s32 %s43, %s39
      %s106 = ssub.s32 %s104, %s105
      %p107 = scmp.eq.s32.totalorder %s106, 0
      %s109 = sadd.s32 %s108, 1
      %s110 = scalar_select %p107, %s108, %s109
      %p113 = pneg %p107
      %p114 = scmp.eq.s32.totalorder %s17, 1
      %p115 = por %p113, %p114
      %p116 = scmp.ne.s32.totalorder %s108, %s111
      %p117 = scmp.eq.s32.totalorder %s17, 0
      %p118 = por %p116, %p117
      %p119 = scmp.ne.s32.totalorder %s108, %s111
      %p120 = scmp.eq.s32.totalorder %s22, 1
      %p121 = por %p119, %p120
      %p122 = scmp.ne.s32.totalorder %s111, %s112
      %p123 = scmp.eq.s32.totalorder %s22, 0
      %p124 = por %p122, %p123
      %p125 = scmp.ne.s32.totalorder %s111, %s112
      %p126 = scmp.eq.s32.totalorder %s23, 1
      %p127 = por %p125, %p126
      %p129 = scmp.ne.s32.totalorder %s112, %s128
      %p130 = scmp.eq.s32.totalorder %s23, 0
      %p131 = por %p129, %p130
      %p132 = scmp.le.s32.totalorder 1, %s17
      %p133 = scmp.lt.s32.totalorder %s17, 3
      %p134 = pnand %p132, %p133
      %p135 = pneg %p134
      // Predicated region
      $region9: #{tpu_custom_call.1} parent=5 // pred_check
        _
      $region10: #{tpu_custom_call.1} parent=5 // pred_check_branch
        %137 = sbr.rel (%p134) target = $region12
      $region11: #{tpu_custom_call.1} parent=5 // pred_region
        %s138 = ssub.s32 %s17, 1
      $region12: #{tpu_custom_call.1} parent=5 // pred_fallthru
        _
      %p139 = scmp.lt.s32.totalorder %s17, 2
      // Predicated region
      $region13: #{tpu_custom_call.1} parent=5 // pred_check
        %p140 = pneg %p139
      $region14: #{tpu_custom_call.1} parent=5 // pred_check_branch
        %142 = sbr.rel (%p140) target = $region16
      $region15: #{tpu_custom_call.1} parent=5 // pred_region
        // Predicated region
        $region17: #{tpu_custom_call.1} parent=15 // pred_check
          %p143 = pneg %p60
        $region18: #{tpu_custom_call.1} parent=15 // pred_check_branch
          %145 = sbr.rel (%p143) target = $region20
        $region19: #{tpu_custom_call.1} parent=15 // pred_region
          %s146 = sand.u32 %s50, 1
          %s147 = scalar_lea.sflag [#allocation3], %s146
          %s148 = sand.u32 %s50, 1
          %s149 = smul.addr %s148, 32
          %s150 = scalar_lea.vmem [#allocation2], %s149
          %s151 = sadd.s32 %s25, %s26
          %153 = vsyncadd %s147, 0
          %s154 = smul.addr %s24, 4
          %s155 = sadd.s32 %s151, %s154
          %s156 = smul.addr %s155, 8
          %s157 = scalar_lea.hbm %s0, %s156
          %s158 = sshll.u32 %s157, 4
          %s159 = int_to_ptr.hbm [resolvable:$true] %s158
          %s160 = sshll.u32 %s150, 4
          %s161 = int_to_ptr.vmem [resolvable:$true] %s160
          %166 = dma.hbm_to_vmem [thread:$0]  %s159, 512, %s161, %s147, 128, 128, 8
        $region20: #{tpu_custom_call.1} parent=15 // pred_fallthru
          _
        // Predicated region
        $region21: #{tpu_custom_call.1} parent=15 // pred_check
          %p167 = pneg %p90
        $region22: #{tpu_custom_call.1} parent=15 // pred_check_branch
          %169 = sbr.rel (%p167) target = $region24
        $region23: #{tpu_custom_call.1} parent=15 // pred_region
          %s170 = sand.u32 %s80, 1
          %s171 = scalar_lea.sflag [#allocation6], %s170
          %s172 = sand.u32 %s80, 1
          %s173 = smul.addr %s172, 8
          %s174 = scalar_lea.vmem [#allocation5], %s173
          %s175 = sadd.s32 %s25, %s26
          %177 = vsyncadd %s171, 0
          %s178 = sadd.s32 %s175, %s24
          %s179 = smul.addr %s178, 8
          %s180 = scalar_lea.hbm %s1, %s179
          %s182 = sshll.u32 %s180, 4
          %s183 = int_to_ptr.hbm [resolvable:$true] %s182
          %s184 = sshll.u32 %s174, 4
          %s185 = int_to_ptr.vmem [resolvable:$true] %s184
          %187 = dma.hbm_to_vmem [thread:$0]  %s183, 128, %s185, %s171
        $region24: #{tpu_custom_call.1} parent=15 // pred_fallthru
          _
      $region16: #{tpu_custom_call.1} parent=5 // pred_fallthru
        _
      %p188 = scmp.le.s32.totalorder 1, %s17
      %p189 = scmp.lt.s32.totalorder %s17, 3
      %p190 = pnand %p188, %p189
      %p191 = pneg %p190
      // Predicated region
      $region25: #{tpu_custom_call.1} parent=5 // pred_check
        _
      $region26: #{tpu_custom_call.1} parent=5 // pred_check_branch
        %193 = sbr.rel (%p190) target = $region28
      $region27: #{tpu_custom_call.1} parent=5 // pred_region
        %s194 = ssub.s32 %s17, 1
        %s195 = sand.u32 %s53, 1
        %s196 = scalar_lea.sflag [#allocation3], %s195
        %s197 = sand.u32 %s53, 1
        %s198 = smul.addr %s197, 32
        %s199 = scalar_lea.vmem [#allocation2], %s198
        // Predicated region
        $region29: #{tpu_custom_call.1} parent=27 // pred_check
          %p200 = pneg %p66
        $region30: #{tpu_custom_call.1} parent=27 // pred_check_branch
          %202 = sbr.rel (%p200) target = $region32
        $region31: #{tpu_custom_call.1} parent=27 // pred_region
          %204 = dma.done %s196, 512
        $region32: #{tpu_custom_call.1} parent=27 // pred_fallthru
          _
        %s205 = sand.u32 %s83, 1
        %s206 = scalar_lea.sflag [#allocation6], %s205
        %s207 = sand.u32 %s83, 1
        %s208 = smul.addr %s207, 8
        %s209 = scalar_lea.vmem [#allocation5], %s208
        // Predicated region
        $region33: #{tpu_custom_call.1} parent=27 // pred_check
          %p210 = pneg %p96
        $region34: #{tpu_custom_call.1} parent=27 // pred_check_branch
          %212 = sbr.rel (%p210) target = $region36
        $region35: #{tpu_custom_call.1} parent=27 // pred_region
          %214 = dma.done %s206, 128
        $region36: #{tpu_custom_call.1} parent=27 // pred_fallthru
          _
        %s215 = sand.u32 %s53, 1
        %s216 = scalar_lea.sflag [#allocation3], %s215
        %s217 = sand.u32 %s53, 1
        %s218 = smul.addr %s217, 32
        %s219 = scalar_lea.vmem [#allocation2], %s218
        %p220 = pneg %p66
        %p221 = pneg %p63
        %s222 = sand.u32 %s83, 1
        %s223 = scalar_lea.sflag [#allocation6], %s222
        %s224 = sand.u32 %s83, 1
        %s225 = smul.addr %s224, 8
        %s226 = scalar_lea.vmem [#allocation5], %s225
        %p227 = pneg %p96
        %p228 = pneg %p93
        %p229 = pneg %p124
        %p230 = pneg %p121
        %s231 = sand.u32 %s111, 1
        %s232 = scalar_lea.sflag [#allocation4], %s231
        %s233 = sand.u32 %s111, 1
        %s234 = smul.addr %s233, 128
        %s235 = scalar_lea.vmem [#allocation7], %s234
        %s236 = sadd.s32 %s28, %s29
        %s237 = sadd.s32 %s28, %s29
        %s238 = sadd.s32 %s27, %s28
        %p239 = scmp.eq.s32.totalorder %s29, 0
        // Predicated region
        $region37: #{tpu_custom_call.1} parent=27 // pred_check
          %p240 = pneg %p239
        $region38: #{tpu_custom_call.1} parent=27 // pred_check_branch
          %242 = sbr.rel (%p240) target = $region40
        $region39: #{tpu_custom_call.1} parent=27 // pred_region
          %243 = vst [vmem:[%s235] sm:$0xff] 0.0
          %244 = vst [vmem:[%s235 + $0x8] sm:$0xff] 0.0
          %245 = vst [vmem:[%s235 + $0x10] sm:$0xff] 0.0
          %246 = vst [vmem:[%s235 + $0x18] sm:$0xff] 0.0
          %247 = vst [vmem:[%s235 + $0x20] sm:$0xff] 0.0
          %248 = vst [vmem:[%s235 + $0x28] sm:$0xff] 0.0
          %249 = vst [vmem:[%s235 + $0x30] sm:$0xff] 0.0
          %250 = vst [vmem:[%s235 + $0x38] sm:$0xff] 0.0
          %251 = vst [vmem:[%s235 + $0x40] sm:$0xff] 0.0
          %252 = vst [vmem:[%s235 + $0x48] sm:$0xff] 0.0
          %253 = vst [vmem:[%s235 + $0x50] sm:$0xff] 0.0
          %254 = vst [vmem:[%s235 + $0x58] sm:$0xff] 0.0
          %255 = vst [vmem:[%s235 + $0x60] sm:$0xff] 0.0
          %256 = vst [vmem:[%s235 + $0x68] sm:$0xff] 0.0
          %257 = vst [vmem:[%s235 + $0x70] sm:$0xff] 0.0
          %258 = vst [vmem:[%s235 + $0x78] sm:$0xff] 0.0
        $region40: #{tpu_custom_call.1} parent=27 // pred_fallthru
          _
        %v259 = vld [vmem:[%s199] sm:$0xff]
        %v260 = vld [vmem:[%s199 + $0x8] sm:$0xff]
        %v261 = vld [vmem:[%s199 + $0x10] sm:$0xff]
        %v262 = vld [vmem:[%s199 + $0x18] sm:$0xff]
        %v263 = vld [vmem:[%s209] sm:$0xff]
        %v264 = vmax.f32 %v259, %v260
        %v265 = vmax.f32 %v261, %v262
        %v266 = vmax.f32 %v264, %v265
        %v267 = vsub.f32 %v259, %v266
        %v268 = vsub.f32 %v260, %v266
        %v269 = vsub.f32 %v261, %v266
        %v270 = vsub.f32 %v262, %v266
        %v271 = vmul.f32 %v267, 1.442695
        %v272 = vpow.pop %v271
        %v273 = vmul.f32 %v268, 1.442695
        %v274 = vpow.pop %v273
        %v275 = vmul.f32 %v269, 1.442695
        %v276 = vpow.pop %v275
        %v277 = vmul.f32 %v270, 1.442695
        %v278 = vpow.pop %v277
        %v279 = vadd.f32 %v272, %v274
        %v280 = vadd.f32 %v279, %v276
        %v281 = vadd.f32 %v280, %v278
        %v282 = vrcp.pop %v281
        %v283 = vmul.f32 %v281, %v282
        %v284 = vsub.f32 1.0, %v283
        %v285 = vmul.f32 %v282, %v284
        %v286 = vadd.f32 %v282, %v285
        %vm287 = vweird.f32 %v281
        %vm288 = vweird.f32 %v282
        %vm289 = vmor %vm287, %vm288
        %v290 = vsel %vm289, %v282, %v286
        %v291 = vand.u32 2147483647, %v281
        %vm292 = vcmp.eq.f32.partialorder %v291, 8.507059e+37
        %v293 = vand.u32 %v281, 2147483648
        %v294 = vor.u32 1.1754944e-38, %v293
        %v295 = vsel %vm292, %v294, %v290
        %vm296 = vcmp.ge.s32.totalorder %v263, 0
        %v297 = vsel %vm296, 1, 0
        %v298 = vcvt.s32.f32 %v297
        %v299 = vmul.f32 %v295, %v298
        %v300 = vmul.f32 %v272, %v299
        %v301 = vmul.f32 %v274, %v299
        %v302 = vmul.f32 %v276, %v299
        %v303 = vmul.f32 %v278, %v299
        %vm304 = vcmp.eq.s32.totalorder %v263, 0
        %vm305 = vcmp.eq.s32.totalorder %v263, 1
        %vm306 = vcmp.eq.s32.totalorder %v263, 2
        %vm307 = vcmp.eq.s32.totalorder %v263, 3
        %v308 = vsel %vm304, 1, 0
        %v309 = vsel %vm305, 1, 0
        %v310 = vsel %vm306, 1, 0
        %v311 = vsel %vm307, 1, 0
        %v312 = vcvt.s32.f32 %v308
        %v313 = vcvt.s32.f32 %v309
        %v314 = vcvt.s32.f32 %v310
        %v315 = vcvt.s32.f32 %v311
        %v316 = vsub.f32 1.0, %v300
        %v317 = vsub.f32 1.0, %v301
        %v318 = vsub.f32 1.0, %v302
        %v319 = vsub.f32 1.0, %v303
        %v320 = vsel %vm304, %v300, %v316
        %v321 = vsel %vm305, %v301, %v317
        %v322 = vsel %vm306, %v302, %v318
        %v323 = vsel %vm307, %v303, %v319
        %v324 = vmax.f32 %v320, 1e-07
        %v325 = vmax.f32 %v321, 1e-07
        %v326 = vmax.f32 %v322, 1e-07
        %v327 = vmax.f32 %v323, 1e-07
        %v328 = vsel %vm304, 1.0, 0.5
        %v329 = vsel %vm305, 1.0, 0.5
        %v330 = vsel %vm306, 1.0, 0.5
        %v331 = vsel %vm307, 1.0, 0.5
        %v332 = vmul.f32 %v328, %v298
        %v333 = vmul.f32 %v329, %v298
        %v334 = vmul.f32 %v330, %v298
        %v335 = vmul.f32 %v331, %v298
        %v336 = vlog2.pop %v324
        %v337 = vmul.f32 %v336, 0.6931472
        %v338 = vlog2.pop %v325
        %v339 = vmul.f32 %v338, 0.6931472
        %v340 = vlog2.pop %v326
        %v341 = vmul.f32 %v340, 0.6931472
        %v342 = vlog2.pop %v327
        %v343 = vmul.f32 %v342, 0.6931472
        %v344 = vmul.f32 %v332, %v337
        %v345 = vmul.f32 %v333, %v339
        %v346 = vmul.f32 %v334, %v341
        %v347 = vmul.f32 %v335, %v343
        %v348 = vld [vmem:[%s235] sm:$0xff]
        %v349 = vld [vmem:[%s235 + $0x8] sm:$0xff]
        %v350 = vld [vmem:[%s235 + $0x10] sm:$0xff]
        %v351 = vld [vmem:[%s235 + $0x18] sm:$0xff]
        %v352 = vmul.f32 %v300, %v312
        %v353 = vmul.f32 %v301, %v313
        %v354 = vmul.f32 %v302, %v314
        %v355 = vmul.f32 %v303, %v315
        %v356 = vadd.f32 %v352, 0.0
        %v357 = vadd.f32 %v353, 0.0
        %v358 = vadd.f32 %v354, 0.0
        %v359 = vadd.f32 %v355, 0.0
        %v360 = vadd.f32 %v348, %v356
        %v361 = vadd.f32 %v349, %v357
        %v362 = vadd.f32 %v350, %v358
        %v363 = vadd.f32 %v351, %v359
        %364 = vst [vmem:[%s235] sm:$0xff] %v360
        %365 = vst [vmem:[%s235 + $0x8] sm:$0xff] %v361
        %366 = vst [vmem:[%s235 + $0x10] sm:$0xff] %v362
        %367 = vst [vmem:[%s235 + $0x18] sm:$0xff] %v363
        %s368 = scalar_lea.vmem %s235, 32 [#allocation7]
        %v369 = vld [vmem:[%s368] sm:$0xff]
        %v370 = vld [vmem:[%s368 + $0x8] sm:$0xff]
        %v371 = vld [vmem:[%s368 + $0x10] sm:$0xff]
        %v372 = vld [vmem:[%s368 + $0x18] sm:$0xff]
        %v373 = vadd.f32 %v300, 0.0
        %v374 = vadd.f32 %v301, 0.0
        %v375 = vadd.f32 %v302, 0.0
        %v376 = vadd.f32 %v303, 0.0
        %v377 = vadd.f32 %v369, %v373
        %v378 = vadd.f32 %v370, %v374
        %v379 = vadd.f32 %v371, %v375
        %v380 = vadd.f32 %v372, %v376
        %381 = vst [vmem:[%s368] sm:$0xff] %v377
        %382 = vst [vmem:[%s368 + $0x8] sm:$0xff] %v378
        %383 = vst [vmem:[%s368 + $0x10] sm:$0xff] %v379
        %384 = vst [vmem:[%s368 + $0x18] sm:$0xff] %v380
        %s385 = scalar_lea.vmem %s235, 64 [#allocation7]
        %v386 = vld [vmem:[%s385] sm:$0xff]
        %v387 = vld [vmem:[%s385 + $0x8] sm:$0xff]
        %v388 = vld [vmem:[%s385 + $0x10] sm:$0xff]
        %v389 = vld [vmem:[%s385 + $0x18] sm:$0xff]
        %v390 = vadd.f32 %v312, 0.0
        %v391 = vadd.f32 %v313, 0.0
        %v392 = vadd.f32 %v314, 0.0
        %v393 = vadd.f32 %v315, 0.0
        %v394 = vadd.f32 %v386, %v390
        %v395 = vadd.f32 %v387, %v391
        %v396 = vadd.f32 %v388, %v392
        %v397 = vadd.f32 %v389, %v393
        %398 = vst [vmem:[%s385] sm:$0xff] %v394
        %399 = vst [vmem:[%s385 + $0x8] sm:$0xff] %v395
        %400 = vst [vmem:[%s385 + $0x10] sm:$0xff] %v396
        %401 = vst [vmem:[%s385 + $0x18] sm:$0xff] %v397
        %s402 = scalar_lea.vmem %s235, 96 [#allocation7]
        %v403 = vld [vmem:[%s402] sm:$0xff]
        %v404 = vld [vmem:[%s402 + $0x8] sm:$0xff]
        %v405 = vld [vmem:[%s402 + $0x10] sm:$0xff]
        %v406 = vld [vmem:[%s402 + $0x18] sm:$0xff]
        %v407 = vadd.f32 %v344, 0.0
        %v408 = vadd.f32 %v345, 0.0
        %v409 = vadd.f32 %v346, 0.0
        %v410 = vadd.f32 %v347, 0.0
        %v411 = vadd.f32 %v403, %v407
        %v412 = vadd.f32 %v404, %v408
        %v413 = vadd.f32 %v405, %v409
        %v414 = vadd.f32 %v406, %v410
        %415 = vst [vmem:[%s402] sm:$0xff] %v411
        %416 = vst [vmem:[%s402 + $0x8] sm:$0xff] %v412
        %417 = vst [vmem:[%s402 + $0x10] sm:$0xff] %v413
        %418 = vst [vmem:[%s402 + $0x18] sm:$0xff] %v414
        %s419 = sand.u32 %s111, 1
        %s420 = scalar_lea.sflag [#allocation4], %s419
        %s421 = sand.u32 %s111, 1
        %s422 = smul.addr %s421, 128
        %s423 = scalar_lea.vmem [#allocation7], %s422
        // Predicated region
        $region41: #{tpu_custom_call.1} parent=27 // pred_check
          %p424 = pneg %p121
        $region42: #{tpu_custom_call.1} parent=27 // pred_check_branch
          %426 = sbr.rel (%p424) target = $region44
        $region43: #{tpu_custom_call.1} parent=27 // pred_region
          %s427 = sadd.s32 %s27, %s28
          %429 = vsyncadd %s420, 0
          %s430 = smul.addr %s427, 16
          %s431 = smul.addr %s430, 8
          %s432 = scalar_lea.hbm %s2, %s431
          %s433 = sshll.u32 %s423, 4
          %s434 = int_to_ptr.vmem [resolvable:$true] %s433
          %s435 = sshll.u32 %s432, 4
          %s436 = int_to_ptr.hbm [resolvable:$true] %s435
          %441 = dma.vmem_to_hbm [thread:$0]  %s434, 2048, %s436, %s420, 128, 128, 8
        $region44: #{tpu_custom_call.1} parent=27 // pred_fallthru
          _
      $region28: #{tpu_custom_call.1} parent=5 // pred_fallthru
        _
      %p442 = scmp.le.s32.totalorder 2, %s17
      // Predicated region
      $region45: #{tpu_custom_call.1} parent=5 // pred_check
        %p443 = pneg %p442
      $region46: #{tpu_custom_call.1} parent=5 // pred_check_branch
        %445 = sbr.rel (%p443) target = $region48
      $region47: #{tpu_custom_call.1} parent=5 // pred_region
        %s446 = ssub.s32 %s17, 2
        // Predicated region
        $region49: #{tpu_custom_call.1} parent=47 // pred_check
          %p447 = pneg %p127
        $region50: #{tpu_custom_call.1} parent=47 // pred_check_branch
          %449 = sbr.rel (%p447) target = $region52
        $region51: #{tpu_custom_call.1} parent=47 // pred_region
          %s450 = sand.u32 %s112, 1
          %s451 = scalar_lea.sflag [#allocation4], %s450
          %s452 = sand.u32 %s112, 1
          %s453 = smul.addr %s452, 128
          %s454 = scalar_lea.vmem [#allocation7], %s453
          %456 = dma.done %s451, 2048
        $region52: #{tpu_custom_call.1} parent=47 // pred_fallthru
          _
      $region48: #{tpu_custom_call.1} parent=5 // pred_fallthru
        _
    $region6: #{tpu_custom_call.1} parent=1 // loop_footer
      %s21 = sadd.s32 1, %s17
    $region7: #{tpu_custom_call.1} parent=1 // loop_footer_branch
      %16 = sbr.rel target = $region3
    $region8: #{tpu_custom_call.1} parent=1 // loop_exit
      _
    %457 = vsyncpa [#allocation3], 1
    %s458 = scalar_lea.sflag [#allocation3], 1
    %459 = vsyncpa %s458, 1
    %460 = vsyncpa [#allocation6], 1
    %s461 = scalar_lea.sflag [#allocation6], 1
    %462 = vsyncpa %s461, 1
    %463 = vsyncpa [#allocation4], 1
    %s464 = scalar_lea.sflag [#allocation4], 1
    %465 = vsyncpa %s464, 1

</llo_original>
